<compile_context>
chip_gen: v6e
topology: v6e:2x2x1
jax: 0.10.0
libtpu: 0.0.40
codegen_flags: <defaults>
</compile_context>

<pallas_src>
import jax
import jax.numpy as jnp
from jax.experimental import pallas as pl
from jax.experimental.pallas import tpu as pltpu

C_IN = 6
C_OUT = 8
GROUPS = 2
CIN_G = C_IN // GROUPS    # 3
COUT_G = C_OUT // GROUPS  # 4

_MIN_TILE = 512             # lane-tile granularity (multiple of 128)
_MAX_TILE = 65536           # 1.5 MiB in / 2 MiB out per image per block (f32)
_TARGET_BLOCK_BYTES = 1 << 20
_MAX_BATCH_TILE = 32


def _round_up(x, m):
    return (x + m - 1) // m * m


def _choose_tiles(N, HW):
    """Pick (spatial_tile, batch_tile) for the grid."""
    if HW <= _MIN_TILE:
        tile = HW                                   # full-dim block (always legal)
    else:
        if N == 1:
            # Ensure >= 2 spatial grid steps so both v7x TensorCores get work.
            tile = _round_up(pl.cdiv(HW, 2), _MIN_TILE)
        else:
            tile = _round_up(HW, _MIN_TILE)
        tile = min(tile, _MAX_TILE)
        if tile >= HW:                              # single block -> exact HW
            tile = HW
    # When each image's spatial block is small, pack several images per step.
    per_image_bytes = C_IN * tile * 4
    bt = max(1, min(N, _TARGET_BLOCK_BYTES // per_image_bytes, _MAX_BATCH_TILE))
    return tile, bt


def _grouped_conv1x1_kernel(x_ref, w_ref, b_ref, o_ref):
    # x_ref: (Bt, 6, T)  lane-dense spatial tile (channels on sublanes)
    # w_ref: (8, 6)      block-diagonal grouped weight
    # b_ref: (8, 1)      f32 bias with the "-42" already folded in
    # o_ref: (Bt, 8, T)
    w = w_ref[...]
    b = b_ref[...]
    for i in range(x_ref.shape[0]):                                   # static unroll
        y = jnp.dot(w, x_ref[i], preferred_element_type=jnp.float32)  # (8, T)
        o_ref[i] = (y + b).astype(o_ref.dtype)


def _block_diag_weight(weight):
    # weight: (C_OUT, CIN_G) = (8, 3) grouped-conv weight -> (8, 6) block-diag.
    wbd = jnp.zeros((C_OUT, C_IN), weight.dtype)
    wbd = wbd.at[:COUT_G, :CIN_G].set(weight[:COUT_G])
    wbd = wbd.at[COUT_G:, CIN_G:].set(weight[COUT_G:])
    return wbd


def grouped_conv1x1_minus_42(x_nchw, weight, bias):
    """Grouped 1x1 conv (6->8, groups=2) + bias - 42, natively on NCHW.

    x_nchw: (N, 6, H, W); weight: (8, 3); bias: (8,).
    """
    N, C, H, W = x_nchw.shape
    assert C == C_IN
    HW = H * W

    x3 = x_nchw.reshape(N, C_IN, HW)                 # free row-major reshape
    tile, bt = _choose_tiles(N, HW)

    wbd = _block_diag_weight(weight)
    # Fold "-42" into the bias in f32 (exact for f32 activations; keeps full
    # precision even if activations are ever bf16).
    b2 = (bias.astype(jnp.float32) - 42.0).reshape(C_OUT, 1)

    grid = (pl.cdiv(N, bt), pl.cdiv(HW, tile))
    out3 = pl.pallas_call(
        _grouped_conv1x1_kernel,
        out_shape=jax.ShapeDtypeStruct((N, C_OUT, HW), x_nchw.dtype),
        grid_spec=pl.GridSpec(
            grid=grid,
            in_specs=[
                pl.BlockSpec((bt, C_IN, tile), lambda nb, j: (nb, 0, j)),
                pl.BlockSpec((C_OUT, C_IN), lambda nb, j: (0, 0)),
                pl.BlockSpec((C_OUT, 1), lambda nb, j: (0, 0)),
            ],
            out_specs=pl.BlockSpec((bt, C_OUT, tile), lambda nb, j: (nb, 0, j)),
        ),
        compiler_params=pltpu.CompilerParams(
            dimension_semantics=("parallel", "parallel")),
    )(x3, wbd, b2)

    return out3.reshape(N, C_OUT, H, W)


def _reference(x_nchw, weight, bias):
    # Pure-JAX reference of the grouped 1x1 conv + bias - 42.
    N, _, H, W = x_nchw.shape
    xg = x_nchw.reshape(N, GROUPS, CIN_G, H * W)                 # (N, 2, 3, HW)
    wg = weight.reshape(GROUPS, COUT_G, CIN_G)                   # (2, 4, 3)
    y = jnp.einsum("ngci,goc->ngoi", xg, wg).reshape(N, C_OUT, H, W)
    return y + bias[None, :, None, None] - 42.0


if __name__ == "__main__":
    key = jax.random.PRNGKey(0)
    kx, kw, kb = jax.random.split(key, 3)

    # Deterministic parameter init (PyTorch-like uniform bound 1/sqrt(fan_in)).
    fan_in = CIN_G * 1 * 1
    bound = 1.0 / (fan_in ** 0.5)
    weight = jax.random.uniform(kw, (C_OUT, CIN_G),
                                minval=-bound, maxval=bound, dtype=jnp.float32)
    bias = jax.random.uniform(kb, (C_OUT,), minval=-bound, maxval=bound,
                              dtype=jnp.float32)

    # Primary shape from the module spec: x = torch.randn(1, 6, 64, 64).
    x = jax.random.normal(kx, (1, C_IN, 64, 64), dtype=jnp.float32)
    out = jax.block_until_ready(grouped_conv1x1_minus_42(x, weight, bias))
    assert out.shape == (1, C_OUT, 64, 64)
    assert jnp.allclose(out, _reference(x, weight, bias), atol=1e-5, rtol=1e-5)

    # Extra shapes exercising the ragged-spatial-tile and batch-tiling paths.
    for shape in [(1, C_IN, 48, 50),   # HW=2400: two spatial tiles, last one ragged
                  (3, C_IN, 20, 20)]:  # small HW: several images per grid step
        xt = jax.random.normal(kx, shape, dtype=jnp.float32)
        ot = jax.block_until_ready(grouped_conv1x1_minus_42(xt, weight, bias))
        assert jnp.allclose(ot, _reference(xt, weight, bias), atol=1e-5, rtol=1e-5)

    print("KERNEL_OK")
</pallas_src>

<mosaic_0001>
module attributes {stable_mosaic.version = 11 : i64} {
  func.func @_grouped_conv1x1_kernel(%arg0: i32, %arg1: i32, %arg2: memref<1x6x2048xf32, #tpu.memory_space<vmem>>, %arg3: memref<8x6xf32, #tpu.memory_space<vmem>>, %arg4: memref<8x1xf32, #tpu.memory_space<vmem>>, %arg5: memref<1x8x2048xf32, #tpu.memory_space<vmem>>) attributes {dimension_semantics = [#tpu.dimension_semantics<parallel>, #tpu.dimension_semantics<parallel>], iteration_bounds = array<i64: 1, 2>, scalar_prefetch = 0 : i64, scratch_operands = 0 : i64, tpu.core_type = #tpu.core_type<tc>, window_params = [{transform_indices = @transform_0, window_bounds = array<i64: 1, 6, 2048>}, {pipeline_mode = #tpu.pipeline_mode<synchronous>, transform_indices = @transform_1, window_bounds = array<i64: 8, 6>}, {pipeline_mode = #tpu.pipeline_mode<synchronous>, transform_indices = @transform_2, window_bounds = array<i64: 8, 1>}, {transform_indices = @transform_3, window_bounds = array<i64: 1, 8, 2048>}]} {
    %c0 = arith.constant 0 : index
    %c0_0 = arith.constant 0 : index
    %0 = vector.load %arg3[%c0, %c0_0] : memref<8x6xf32, #tpu.memory_space<vmem>>, vector<8x6xf32>
    %c0_1 = arith.constant 0 : index
    %c0_2 = arith.constant 0 : index
    %1 = vector.load %arg4[%c0_1, %c0_2] : memref<8x1xf32, #tpu.memory_space<vmem>>, vector<8x1xf32>
    %c0_3 = arith.constant 0 : index
    %c0_4 = arith.constant 0 : index
    %c0_5 = arith.constant 0 : index
    %2 = vector.load %arg2[%c0_3, %c0_4, %c0_5] : memref<1x6x2048xf32, #tpu.memory_space<vmem>>, vector<1x6x2048xf32>
    %3 = vector.shape_cast %2 : vector<1x6x2048xf32> to vector<6x2048xf32>
    %cst = arith.constant dense<0.000000e+00> : vector<8x2048xf32>
    %4 = tpu.matmul %0, %3, %cst {dimension_numbers = #tpu.dot_dimension_numbers<[1], [0], [0], [1], [0, 0, 1, 1], [], []>} : vector<8x6xf32>, vector<6x2048xf32>, vector<8x2048xf32> -> vector<8x2048xf32>
    %5 = vector.broadcast %1 : vector<8x1xf32> to vector<8x2048xf32>
    %6 = arith.addf %4, %5 : vector<8x2048xf32>
    %c0_6 = arith.constant 0 : index
    %c0_7 = arith.constant 0 : index
    %c0_8 = arith.constant 0 : index
    %7 = vector.load %arg5[%c0_6, %c0_7, %c0_8] : memref<1x8x2048xf32, #tpu.memory_space<vmem>>, vector<1x8x2048xf32>
    %8 = vector.shape_cast %7 : vector<1x8x2048xf32> to vector<8x2048xf32>
    %9 = vector.shape_cast %6 : vector<8x2048xf32> to vector<1x8x2048xf32>
    tpu.vector_store %arg5[%c0_6, %c0_7, %c0_8], %9 {strides = array<i32>} : memref<1x8x2048xf32, #tpu.memory_space<vmem>>, vector<1x8x2048xf32>,
    return
  }
  func.func @transform_0(%arg0: i32, %arg1: i32) -> (i32, i32, i32) {
    %c0_i32 = arith.constant 0 : i32
    %c0_i32_0 = arith.constant 0 : i32
    return %arg0, %c0_i32, %arg1 : i32, i32, i32
  }
  func.func @transform_1(%arg0: i32, %arg1: i32) -> (i32, i32) {
    %c0_i32 = arith.constant 0 : i32
    %c0_i32_0 = arith.constant 0 : i32
    %c0_i32_1 = arith.constant 0 : i32
    return %c0_i32, %c0_i32_0 : i32, i32
  }
  func.func @transform_2(%arg0: i32, %arg1: i32) -> (i32, i32) {
    %c0_i32 = arith.constant 0 : i32
    %c0_i32_0 = arith.constant 0 : i32
    %c0_i32_1 = arith.constant 0 : i32
    return %c0_i32, %c0_i32_0 : i32, i32
  }
  func.func @transform_3(%arg0: i32, %arg1: i32) -> (i32, i32, i32) {
    %c0_i32 = arith.constant 0 : i32
    %c0_i32_0 = arith.constant 0 : i32
    return %arg0, %c0_i32, %arg1 : i32, i32, i32
  }
}

</mosaic_0001>

<llo_original>
// kernel: tpu_custom_call.1
$region0: #{tpu_custom_call.1}
  #allocation0 [shape = 'u32[]', space=smem, size = 0x4, offset = 0x4, fixed_abs, tag = 'smem constant byte address 0x4 - core index']
  #allocation1 [shape = 'u32[144,128]{1,0:T(1,128)}', space=vmem, size = 0x12000, scoped, tag = 'internal scratch']
  %s0 = inlined_call_operand.vmem [shape: f32[1,6,4096], index: 0, kind: input, shape index: {}]
  %s1 = inlined_call_operand.vmem [shape: f32[8,6], index: 1, kind: input, shape index: {}]
  %s2 = inlined_call_operand.vmem [shape: f32[8,1], index: 2, kind: input, shape index: {}]
  %s3 = inlined_call_operand.hbm [shape: f32[1,8,4096], index: 3, kind: output, shape index: {}]
  %s4 = sld [smem:[#allocation0]]
  $region45: #{tpu_custom_call.1} parent=0
    _
  %s6 = ssub.s32 1, %s4
  %s7 = scalar_select 0, %s6, %s4
  $region1: #{tpu_custom_call.1} parent=0
    #allocation2 [shape = 'u8[131072]{0}', space=vmem, size = 0x20000, scoped, tag = 'output window, operand 0']
    #allocation3 [shape = 's32[2]{0}', space=sflag, size = 0x8, scoped, tag = 'scoped memory for tpu_custom_call.1']
    %8 = vsyncpa [#allocation3], 0
    %s9 = scalar_lea.sflag [#allocation3], 1
    %10 = vsyncpa %s9, 0
    loop: start=0, step=1, limit=4
    $region2: #{tpu_custom_call.1} parent=1 // loop_pre_header
      _
    $region3: #{tpu_custom_call.1} parent=1 // loop_header
      %s12 = sphi 0, %s16
      %p13 = scmp.ge.s32.totalorder %s12, 4
      %s19 = sphi 0, %s31
      %s20 = sphi 0, %s27
      %s21 = sphi 0, %s19
      %s22 = sphi 0, %s20
      %s23 = sphi 0, %s21
      %s24 = sphi 0, %s22
      %s36 = sphi 0, %s38
      %s39 = sphi 0, %s36
      %s40 = sphi 0, %s39
      %s56 = sphi 0, %s40
      %s60 = sphi 0, %s60
      %s62 = sphi 0, %s60
      %s63 = sphi 0, %s62
      %s77 = sphi 0, %s63
      %s81 = sphi 0, %s81
      %s83 = sphi 0, %s81
      %s84 = sphi 0, %s83
      %s98 = sphi 0, %s84
      %s106 = sphi 0, %s108
      %s109 = sphi 0, %s106
      %s110 = sphi 0, %s109
      %s126 = sphi 0, %s110
    $region4: #{tpu_custom_call.1} parent=1 // loop_header_branch
      %15 = sbr.rel (%p13) target = $region8
    $region5: #{tpu_custom_call.1} parent=1 // loop_body
      %s17 = ssub.s32 %s12, 1
      %s18 = ssub.s32 %s12, 2
      %s25 = sadd.s32 1, %s20
      %p26 = scmp.ge.s32.totalorder %s25, 2
      %s27 = scalar_select %p26, 0, %s25
      %s28 = sadd.s32 1, %s19
      %s29 = scalar_select %p26, %s28, %s19
      %p30 = scmp.ge.s32.totalorder %s29, 1
      %s31 = scalar_select %p30, 0, %s29
      %s32 = ssub.s32 %s19, %s31
      %s33 = ssub.s32 %s20, %s27
      %s34 = sor.u32 %s32, %s33
      %p35 = scmp.eq.s32.totalorder %s34, 0
      %s37 = sadd.s32 %s36, 1
      %s38 = scalar_select %p35, %s36, %s37
      %p41 = pneg %p35
      %p42 = scmp.eq.s32.totalorder %s12, 1
      %p43 = por %p41, %p42
      %p44 = scmp.ne.s32.totalorder %s36, %s39
      %p45 = scmp.eq.s32.totalorder %s12, 0
      %p46 = por %p44, %p45
      %p47 = scmp.ne.s32.totalorder %s36, %s39
      %p48 = scmp.eq.s32.totalorder %s17, 1
      %p49 = por %p47, %p48
      %p50 = scmp.ne.s32.totalorder %s39, %s40
      %p51 = scmp.eq.s32.totalorder %s17, 0
      %p52 = por %p50, %p51
      %p53 = scmp.ne.s32.totalorder %s39, %s40
      %p54 = scmp.eq.s32.totalorder %s18, 1
      %p55 = por %p53, %p54
      %p57 = scmp.ne.s32.totalorder %s40, %s56
      %p58 = scmp.eq.s32.totalorder %s18, 0
      %p59 = por %p57, %p58
      %s61 = sadd.s32 %s60, 1
      %p64 = scmp.eq.s32.totalorder %s12, 1
      %p65 = scmp.ne.s32.totalorder %s60, %s62
      %p66 = scmp.eq.s32.totalorder %s12, 0
      %p67 = por %p65, %p66
      %p68 = scmp.ne.s32.totalorder %s60, %s62
      %p69 = scmp.eq.s32.totalorder %s17, 1
      %p70 = por %p68, %p69
      %p71 = scmp.ne.s32.totalorder %s62, %s63
      %p72 = scmp.eq.s32.totalorder %s17, 0
      %p73 = por %p71, %p72
      %p74 = scmp.ne.s32.totalorder %s62, %s63
      %p75 = scmp.eq.s32.totalorder %s18, 1
      %p76 = por %p74, %p75
      %p78 = scmp.ne.s32.totalorder %s63, %s77
      %p79 = scmp.eq.s32.totalorder %s18, 0
      %p80 = por %p78, %p79
      %s82 = sadd.s32 %s81, 1
      %p85 = scmp.eq.s32.totalorder %s12, 1
      %p86 = scmp.ne.s32.totalorder %s81, %s83
      %p87 = scmp.eq.s32.totalorder %s12, 0
      %p88 = por %p86, %p87
      %p89 = scmp.ne.s32.totalorder %s81, %s83
      %p90 = scmp.eq.s32.totalorder %s17, 1
      %p91 = por %p89, %p90
      %p92 = scmp.ne.s32.totalorder %s83, %s84
      %p93 = scmp.eq.s32.totalorder %s17, 0
      %p94 = por %p92, %p93
      %p95 = scmp.ne.s32.totalorder %s83, %s84
      %p96 = scmp.eq.s32.totalorder %s18, 1
      %p97 = por %p95, %p96
      %p99 = scmp.ne.s32.totalorder %s84, %s98
      %p100 = scmp.eq.s32.totalorder %s18, 0
      %p101 = por %p99, %p100
      %s102 = ssub.s32 %s19, %s31
      %s103 = ssub.s32 %s20, %s27
      %s104 = sor.u32 %s102, %s103
      %p105 = scmp.eq.s32.totalorder %s104, 0
      %s107 = sadd.s32 %s106, 1
      %s108 = scalar_select %p105, %s106, %s107
      %p111 = pneg %p105
      %p112 = scmp.eq.s32.totalorder %s12, 1
      %p113 = por %p111, %p112
      %p114 = scmp.ne.s32.totalorder %s106, %s109
      %p115 = scmp.eq.s32.totalorder %s12, 0
      %p116 = por %p114, %p115
      %p117 = scmp.ne.s32.totalorder %s106, %s109
      %p118 = scmp.eq.s32.totalorder %s17, 1
      %p119 = por %p117, %p118
      %p120 = scmp.ne.s32.totalorder %s109, %s110
      %p121 = scmp.eq.s32.totalorder %s17, 0
      %p122 = por %p120, %p121
      %p123 = scmp.ne.s32.totalorder %s109, %s110
      %p124 = scmp.eq.s32.totalorder %s18, 1
      %p125 = por %p123, %p124
      %p127 = scmp.ne.s32.totalorder %s110, %s126
      %p128 = scmp.eq.s32.totalorder %s18, 0
      %p129 = por %p127, %p128
      %p130 = scmp.le.s32.totalorder 1, %s12
      %p131 = scmp.lt.s32.totalorder %s12, 3
      %p132 = pnand %p130, %p131
      %p133 = pneg %p132
      // Predicated region
      $region9: #{tpu_custom_call.1} parent=5 // pred_check
        _
      $region10: #{tpu_custom_call.1} parent=5 // pred_check_branch
        %135 = sbr.rel (%p132) target = $region12
      $region11: #{tpu_custom_call.1} parent=5 // pred_region
        %s136 = ssub.s32 %s12, 1
        // Predicated region
        $region13: #{tpu_custom_call.1} parent=11 // pred_check
          %p137 = pneg %p73
        $region14: #{tpu_custom_call.1} parent=11 // pred_check_branch
          %139 = sbr.rel (%p137) target = $region16
        $region15: #{tpu_custom_call.1} parent=11 // pred_region
          _
        $region16: #{tpu_custom_call.1} parent=11 // pred_fallthru
          _
        // Predicated region
        $region17: #{tpu_custom_call.1} parent=11 // pred_check
          %p140 = pneg %p94
        $region18: #{tpu_custom_call.1} parent=11 // pred_check_branch
          %142 = sbr.rel (%p140) target = $region20
        $region19: #{tpu_custom_call.1} parent=11 // pred_region
          _
        $region20: #{tpu_custom_call.1} parent=11 // pred_fallthru
          _
      $region12: #{tpu_custom_call.1} parent=5 // pred_fallthru
        _
      %p143 = scmp.lt.s32.totalorder %s12, 2
      // Predicated region
      $region21: #{tpu_custom_call.1} parent=5 // pred_check
        %p144 = pneg %p143
      $region22: #{tpu_custom_call.1} parent=5 // pred_check_branch
        %146 = sbr.rel (%p144) target = $region24
      $region23: #{tpu_custom_call.1} parent=5 // pred_region
        // Predicated region
        $region25: #{tpu_custom_call.1} parent=23 // pred_check
          %p147 = pneg %p46
        $region26: #{tpu_custom_call.1} parent=23 // pred_check_branch
          %149 = sbr.rel (%p147) target = $region28
        $region27: #{tpu_custom_call.1} parent=23 // pred_region
          %s150 = smul.u32 16, %s20
          %p151 = scmp.lt.s32.totalorder %s19, 0
          %s152 = scalar_select %p151, %s19, 0
          %p153 = scmp.lt.s32.totalorder %s150, 31
          %s154 = scalar_select %p153, %s150, 31
          %s155 = smul.addr %s152, 32
          %s156 = sadd.s32 %s154, %s155
          %s157 = smul.addr %s156, 8
          %s158 = scalar_lea.vmem %s0, %s157
          %s159 = smul.u32 16, %s20
        $region28: #{tpu_custom_call.1} parent=23 // pred_fallthru
          _
      $region24: #{tpu_custom_call.1} parent=5 // pred_fallthru
        _
      %p160 = scmp.le.s32.totalorder 1, %s12
      %p161 = scmp.lt.s32.totalorder %s12, 3
      %p162 = pnand %p160, %p161
      %p163 = pneg %p162
      // Predicated region
      $region29: #{tpu_custom_call.1} parent=5 // pred_check
        _
      $region30: #{tpu_custom_call.1} parent=5 // pred_check_branch
        %165 = sbr.rel (%p162) target = $region32
      $region31: #{tpu_custom_call.1} parent=5 // pred_region
        %s166 = ssub.s32 %s12, 1
        %s167 = smul.u32 16, %s22
        %p168 = scmp.lt.s32.totalorder %s21, 0
        %s169 = scalar_select %p168, %s21, 0
        %p170 = scmp.lt.s32.totalorder %s167, 31
        %s171 = scalar_select %p170, %s167, 31
        %s172 = smul.addr %s169, 32
        %s173 = sadd.s32 %s171, %s172
        %s174 = smul.addr %s173, 8
        %s175 = scalar_lea.vmem %s0, %s174
        %p176 = pneg %p52
        %p177 = pneg %p49
        %p178 = pneg %p73
        %p179 = pneg %p70
        %p180 = pneg %p94
        %p181 = pneg %p91
        %p182 = pneg %p122
        %p183 = pneg %p119
        %s184 = sand.u32 %s109, 1
        %s185 = scalar_lea.sflag [#allocation3], %s184
        %s186 = sand.u32 %s109, 1
        %s187 = smul.addr %s186, 128
        %s188 = scalar_lea.vmem [#allocation2], %s187
        %s189 = smul.u32 16, %s22
        %p190 = scmp.lt.s32.totalorder %s21, 0
        %s191 = scalar_select %p190, %s21, 0
        %p192 = scmp.lt.s32.totalorder %s189, 31
        %s193 = scalar_select %p192, %s189, 31
        %s194 = smul.addr %s191, 32
        %s195 = sadd.s32 %s193, %s194
        %s196 = smul.addr %s195, 8
        %s197 = scalar_lea.vmem %s0, %s196
        %s198 = smul.u32 16, %s22
        %s199 = smul.u32 16, %s22
        %v200 = vld [vmem:[%s1] sm:$0xff]
        %v201 = vld [vmem:[%s2] sm:$0xff]
        %v202 = vld [vmem:[%s197] sm:$0x3f]
        %v203 = vld [vmem:[%s197 + $0x8] sm:$0x3f]
        %v204 = vld [vmem:[%s197 + $0x10] sm:$0x3f]
        %v205 = vld [vmem:[%s197 + $0x18] sm:$0x3f]
        %v206 = vld [vmem:[%s197 + $0x20] sm:$0x3f]
        %v207 = vld [vmem:[%s197 + $0x28] sm:$0x3f]
        %v208 = vld [vmem:[%s197 + $0x30] sm:$0x3f]
        %v209 = vld [vmem:[%s197 + $0x38] sm:$0x3f]
        %v210 = vld [vmem:[%s197 + $0x40] sm:$0x3f]
        %v211 = vld [vmem:[%s197 + $0x48] sm:$0x3f]
        %v212 = vld [vmem:[%s197 + $0x50] sm:$0x3f]
        %v213 = vld [vmem:[%s197 + $0x58] sm:$0x3f]
        %v214 = vld [vmem:[%s197 + $0x60] sm:$0x3f]
        %v215 = vld [vmem:[%s197 + $0x68] sm:$0x3f]
        %v216 = vld [vmem:[%s197 + $0x70] sm:$0x3f]
        %v217 = vld [vmem:[%s197 + $0x78] sm:$0x3f]
        %219 = vset.pattern.permute.xlu0 0
        %220 = vperm.xlu0 %219, %v201
        %v221 = vpop.permute.xlu0 %220
        %vm223 = vcmask 48128
        %v225 = vsel %vm223, %v200, 0
        %vm227 = vcmask 1045504
        %v229 = vsel %vm227, %v202, 0
        %v232 = vsel %vm227, %v203, 0
        %v235 = vsel %vm227, %v204, 0
        %v238 = vsel %vm227, %v205, 0
        %v241 = vsel %vm227, %v206, 0
        %v244 = vsel %vm227, %v207, 0
        %v247 = vsel %vm227, %v208, 0
        %v250 = vsel %vm227, %v209, 0
        %v253 = vsel %vm227, %v210, 0
        %v256 = vsel %vm227, %v211, 0
        %v259 = vsel %vm227, %v212, 0
        %v262 = vsel %vm227, %v213, 0
        %v265 = vsel %vm227, %v214, 0
        %v268 = vsel %vm227, %v215, 0
        %v271 = vsel %vm227, %v216, 0
        %v274 = vsel %vm227, %v217, 0
        %276 = vmatprep.subr.mxu0 0.0
        %277 = vmatpush1.msra.mxu0 0.0
        %278 = vmatprep.subr.mxu0 0.0
        %279 = vmatpush1.msra.mxu0 0.0
        %280 = vmatprep.subr.mxu0 0.0
        %281 = vmatpush1.msra.mxu0 0.0
        %282 = vmatprep.subr.mxu0 0.0
        %283 = vmatpush1.msra.mxu0 0.0
        %284 = vmatprep.subr.mxu0 0.0
        %285 = vmatpush1.msra.mxu0 0.0
        %286 = vmatprep.subr.mxu0 0.0
        %287 = vmatpush1.msra.mxu0 0.0
        %288 = vmatprep.subr.mxu0 0.0
        %289 = vmatpush1.msra.mxu0 0.0
        %290 = vmatprep.subr.mxu0 0.0
        %291 = vmatpush1.msra.mxu0 0.0
        %292 = vmatprep.subr.mxu0 0.0
        %293 = vmatpush1.msra.mxu0 0.0
        %294 = vmatprep.subr.mxu0 0.0
        %295 = vmatpush1.msra.mxu0 0.0
        %296 = vmatprep.subr.mxu0 0.0
        %297 = vmatpush1.msra.mxu0 0.0
        %298 = vmatprep.subr.mxu0 0.0
        %299 = vmatpush1.msra.mxu0 0.0
        %300 = vmatprep.subr.mxu0 0.0
        %301 = vmatpush1.msra.mxu0 0.0
        %302 = vmatprep.subr.mxu0 0.0
        %303 = vmatpush1.msra.mxu0 0.0
        %304 = vmatprep.subr.mxu0 0.0
        %305 = vmatpush1.msra.mxu0 0.0
        %306 = vmatprep.subr.mxu0 %v232
        %307 = vmatpush1.msra.mxu0 %v229
        %308 = vmatprep.subr.mxu0 0.0
        %309 = vmatpush2.msra.mxu0 0.0
        %310 = vmatprep.subr.mxu0 0.0
        %311 = vmatpush2.msra.mxu0 0.0
        %312 = vmatprep.subr.mxu0 0.0
        %313 = vmatpush2.msra.mxu0 0.0
        %314 = vmatprep.subr.mxu0 0.0
        %315 = vmatpush2.msra.mxu0 0.0
        %316 = vmatprep.subr.mxu0 0.0
        %317 = vmatpush2.msra.mxu0 0.0
        %318 = vmatprep.subr.mxu0 0.0
        %319 = vmatpush2.msra.mxu0 0.0
        %320 = vmatprep.subr.mxu0 0.0
        %321 = vmatpush2.msra.mxu0 0.0
        %322 = vmatprep.subr.mxu0 0.0
        %323 = vmatpush2.msra.mxu0 0.0
        %324 = vmatprep.subr.mxu0 0.0
        %325 = vmatpush2.msra.mxu0 0.0
        %326 = vmatprep.subr.mxu0 0.0
        %327 = vmatpush2.msra.mxu0 0.0
        %328 = vmatprep.subr.mxu0 0.0
        %329 = vmatpush2.msra.mxu0 0.0
        %330 = vmatprep.subr.mxu0 0.0
        %331 = vmatpush2.msra.mxu0 0.0
        %332 = vmatprep.subr.mxu0 0.0
        %333 = vmatpush2.msra.mxu0 0.0
        %334 = vmatprep.subr.mxu0 0.0
        %335 = vmatpush2.msra.mxu0 0.0
        %336 = vmatprep.subr.mxu0 0.0
        %337 = vmatpush2.msra.mxu0 0.0
        %338 = vmatprep.subr.mxu0 0.0
        %339 = vmatpush2.msra.mxu0 0.0
        %340 = vmatprep.mubr.f32.mxu0 0.0
        %341 = vmatmul.mubr.f32.gmra.mxu0 %v225
        %v342 = vpop.f32.mrf.mxu0
        %v343 = vadd.f32 %v221, %v342
        %v344 = vpop.f32.mrf.mxu0
        %v345 = vadd.f32 %v221, %v344
        %346 = vdwg.mxu0
        %347 = vmatprep.subr.mxu0 0.0
        %348 = vmatpush1.msra.mxu0 0.0
        %349 = vmatprep.subr.mxu0 0.0
        %350 = vmatpush1.msra.mxu0 0.0
        %351 = vmatprep.subr.mxu0 0.0
        %352 = vmatpush1.msra.mxu0 0.0
        %353 = vmatprep.subr.mxu0 0.0
        %354 = vmatpush1.msra.mxu0 0.0
        %355 = vmatprep.subr.mxu0 0.0
        %356 = vmatpush1.msra.mxu0 0.0
        %357 = vmatprep.subr.mxu0 0.0
        %358 = vmatpush1.msra.mxu0 0.0
        %359 = vmatprep.subr.mxu0 0.0
        %360 = vmatpush1.msra.mxu0 0.0
        %361 = vmatprep.subr.mxu0 0.0
        %362 = vmatpush1.msra.mxu0 0.0
        %363 = vmatprep.subr.mxu0 0.0
        %364 = vmatpush1.msra.mxu0 0.0
        %365 = vmatprep.subr.mxu0 0.0
        %366 = vmatpush1.msra.mxu0 0.0
        %367 = vmatprep.subr.mxu0 0.0
        %368 = vmatpush1.msra.mxu0 0.0
        %369 = vmatprep.subr.mxu0 0.0
        %370 = vmatpush1.msra.mxu0 0.0
        %371 = vmatprep.subr.mxu0 0.0
        %372 = vmatpush1.msra.mxu0 0.0
        %373 = vmatprep.subr.mxu0 0.0
        %374 = vmatpush1.msra.mxu0 0.0
        %375 = vmatprep.subr.mxu0 0.0
        %376 = vmatpush1.msra.mxu0 0.0
        %377 = vmatprep.subr.mxu0 %v238
        %378 = vmatpush1.msra.mxu0 %v235
        %379 = vmatprep.subr.mxu0 0.0
        %380 = vmatpush2.msra.mxu0 0.0
        %381 = vmatprep.subr.mxu0 0.0
        %382 = vmatpush2.msra.mxu0 0.0
        %383 = vmatprep.subr.mxu0 0.0
        %384 = vmatpush2.msra.mxu0 0.0
        %385 = vmatprep.subr.mxu0 0.0
        %386 = vmatpush2.msra.mxu0 0.0
        %387 = vmatprep.subr.mxu0 0.0
        %388 = vmatpush2.msra.mxu0 0.0
        %389 = vmatprep.subr.mxu0 0.0
        %390 = vmatpush2.msra.mxu0 0.0
        %391 = vmatprep.subr.mxu0 0.0
        %392 = vmatpush2.msra.mxu0 0.0
        %393 = vmatprep.subr.mxu0 0.0
        %394 = vmatpush2.msra.mxu0 0.0
        %395 = vmatprep.subr.mxu0 0.0
        %396 = vmatpush2.msra.mxu0 0.0
        %397 = vmatprep.subr.mxu0 0.0
        %398 = vmatpush2.msra.mxu0 0.0
        %399 = vmatprep.subr.mxu0 0.0
        %400 = vmatpush2.msra.mxu0 0.0
        %401 = vmatprep.subr.mxu0 0.0
        %402 = vmatpush2.msra.mxu0 0.0
        %403 = vmatprep.subr.mxu0 0.0
        %404 = vmatpush2.msra.mxu0 0.0
        %405 = vmatprep.subr.mxu0 0.0
        %406 = vmatpush2.msra.mxu0 0.0
        %407 = vmatprep.subr.mxu0 0.0
        %408 = vmatpush2.msra.mxu0 0.0
        %409 = vmatprep.subr.mxu0 0.0
        %410 = vmatpush2.msra.mxu0 0.0
        %411 = vmatprep.mubr.f32.mxu0 0.0
        %412 = vmatmul.mubr.f32.gmra.mxu0 %v225
        %v413 = vpop.f32.mrf.mxu0
        %v414 = vadd.f32 %v221, %v413
        %v415 = vpop.f32.mrf.mxu0
        %v416 = vadd.f32 %v221, %v415
        %417 = vdwg.mxu0
        %418 = vmatprep.subr.mxu0 0.0
        %419 = vmatpush1.msra.mxu0 0.0
        %420 = vmatprep.subr.mxu0 0.0
        %421 = vmatpush1.msra.mxu0 0.0
        %422 = vmatprep.subr.mxu0 0.0
        %423 = vmatpush1.msra.mxu0 0.0
        %424 = vmatprep.subr.mxu0 0.0
        %425 = vmatpush1.msra.mxu0 0.0
        %426 = vmatprep.subr.mxu0 0.0
        %427 = vmatpush1.msra.mxu0 0.0
        %428 = vmatprep.subr.mxu0 0.0
        %429 = vmatpush1.msra.mxu0 0.0
        %430 = vmatprep.subr.mxu0 0.0
        %431 = vmatpush1.msra.mxu0 0.0
        %432 = vmatprep.subr.mxu0 0.0
        %433 = vmatpush1.msra.mxu0 0.0
        %434 = vmatprep.subr.mxu0 0.0
        %435 = vmatpush1.msra.mxu0 0.0
        %436 = vmatprep.subr.mxu0 0.0
        %437 = vmatpush1.msra.mxu0 0.0
        %438 = vmatprep.subr.mxu0 0.0
        %439 = vmatpush1.msra.mxu0 0.0
        %440 = vmatprep.subr.mxu0 0.0
        %441 = vmatpush1.msra.mxu0 0.0
        %442 = vmatprep.subr.mxu0 0.0
        %443 = vmatpush1.msra.mxu0 0.0
        %444 = vmatprep.subr.mxu0 0.0
        %445 = vmatpush1.msra.mxu0 0.0
        %446 = vmatprep.subr.mxu0 0.0
        %447 = vmatpush1.msra.mxu0 0.0
        %448 = vmatprep.subr.mxu0 %v244
        %449 = vmatpush1.msra.mxu0 %v241
        %450 = vmatprep.subr.mxu0 0.0
        %451 = vmatpush2.msra.mxu0 0.0
        %452 = vmatprep.subr.mxu0 0.0
        %453 = vmatpush2.msra.mxu0 0.0
        %454 = vmatprep.subr.mxu0 0.0
        %455 = vmatpush2.msra.mxu0 0.0
        %456 = vmatprep.subr.mxu0 0.0
        %457 = vmatpush2.msra.mxu0 0.0
        %458 = vmatprep.subr.mxu0 0.0
        %459 = vmatpush2.msra.mxu0 0.0
        %460 = vmatprep.subr.mxu0 0.0
        %461 = vmatpush2.msra.mxu0 0.0
        %462 = vmatprep.subr.mxu0 0.0
        %463 = vmatpush2.msra.mxu0 0.0
        %464 = vmatprep.subr.mxu0 0.0
        %465 = vmatpush2.msra.mxu0 0.0
        %466 = vmatprep.subr.mxu0 0.0
        %467 = vmatpush2.msra.mxu0 0.0
        %468 = vmatprep.subr.mxu0 0.0
        %469 = vmatpush2.msra.mxu0 0.0
        %470 = vmatprep.subr.mxu0 0.0
        %471 = vmatpush2.msra.mxu0 0.0
        %472 = vmatprep.subr.mxu0 0.0
        %473 = vmatpush2.msra.mxu0 0.0
        %474 = vmatprep.subr.mxu0 0.0
        %475 = vmatpush2.msra.mxu0 0.0
        %476 = vmatprep.subr.mxu0 0.0
        %477 = vmatpush2.msra.mxu0 0.0
        %478 = vmatprep.subr.mxu0 0.0
        %479 = vmatpush2.msra.mxu0 0.0
        %480 = vmatprep.subr.mxu0 0.0
        %481 = vmatpush2.msra.mxu0 0.0
        %482 = vmatprep.mubr.f32.mxu0 0.0
        %483 = vmatmul.mubr.f32.gmra.mxu0 %v225
        %v484 = vpop.f32.mrf.mxu0
        %v485 = vadd.f32 %v221, %v484
        %v486 = vpop.f32.mrf.mxu0
        %v487 = vadd.f32 %v221, %v486
        %488 = vdwg.mxu0
        %489 = vmatprep.subr.mxu0 0.0
        %490 = vmatpush1.msra.mxu0 0.0
        %491 = vmatprep.subr.mxu0 0.0
        %492 = vmatpush1.msra.mxu0 0.0
        %493 = vmatprep.subr.mxu0 0.0
        %494 = vmatpush1.msra.mxu0 0.0
        %495 = vmatprep.subr.mxu0 0.0
        %496 = vmatpush1.msra.mxu0 0.0
        %497 = vmatprep.subr.mxu0 0.0
        %498 = vmatpush1.msra.mxu0 0.0
        %499 = vmatprep.subr.mxu0 0.0
        %500 = vmatpush1.msra.mxu0 0.0
        %501 = vmatprep.subr.mxu0 0.0
        %502 = vmatpush1.msra.mxu0 0.0
        %503 = vmatprep.subr.mxu0 0.0
        %504 = vmatpush1.msra.mxu0 0.0
        %505 = vmatprep.subr.mxu0 0.0
        %506 = vmatpush1.msra.mxu0 0.0
        %507 = vmatprep.subr.mxu0 0.0
        %508 = vmatpush1.msra.mxu0 0.0
        %509 = vmatprep.subr.mxu0 0.0
        %510 = vmatpush1.msra.mxu0 0.0
        %511 = vmatprep.subr.mxu0 0.0
        %512 = vmatpush1.msra.mxu0 0.0
        %513 = vmatprep.subr.mxu0 0.0
        %514 = vmatpush1.msra.mxu0 0.0
        %515 = vmatprep.subr.mxu0 0.0
        %516 = vmatpush1.msra.mxu0 0.0
        %517 = vmatprep.subr.mxu0 0.0
        %518 = vmatpush1.msra.mxu0 0.0
        %519 = vmatprep.subr.mxu0 %v250
        %520 = vmatpush1.msra.mxu0 %v247
        %521 = vmatprep.subr.mxu0 0.0
        %522 = vmatpush2.msra.mxu0 0.0
        %523 = vmatprep.subr.mxu0 0.0
        %524 = vmatpush2.msra.mxu0 0.0
        %525 = vmatprep.subr.mxu0 0.0
        %526 = vmatpush2.msra.mxu0 0.0
        %527 = vmatprep.subr.mxu0 0.0
        %528 = vmatpush2.msra.mxu0 0.0
        %529 = vmatprep.subr.mxu0 0.0
        %530 = vmatpush2.msra.mxu0 0.0
        %531 = vmatprep.subr.mxu0 0.0
        %532 = vmatpush2.msra.mxu0 0.0
        %533 = vmatprep.subr.mxu0 0.0
        %534 = vmatpush2.msra.mxu0 0.0
        %535 = vmatprep.subr.mxu0 0.0
        %536 = vmatpush2.msra.mxu0 0.0
        %537 = vmatprep.subr.mxu0 0.0
        %538 = vmatpush2.msra.mxu0 0.0
        %539 = vmatprep.subr.mxu0 0.0
        %540 = vmatpush2.msra.mxu0 0.0
        %541 = vmatprep.subr.mxu0 0.0
        %542 = vmatpush2.msra.mxu0 0.0
        %543 = vmatprep.subr.mxu0 0.0
        %544 = vmatpush2.msra.mxu0 0.0
        %545 = vmatprep.subr.mxu0 0.0
        %546 = vmatpush2.msra.mxu0 0.0
        %547 = vmatprep.subr.mxu0 0.0
        %548 = vmatpush2.msra.mxu0 0.0
        %549 = vmatprep.subr.mxu0 0.0
        %550 = vmatpush2.msra.mxu0 0.0
        %551 = vmatprep.subr.mxu0 0.0
        %552 = vmatpush2.msra.mxu0 0.0
        %553 = vmatprep.mubr.f32.mxu0 0.0
        %554 = vmatmul.mubr.f32.gmra.mxu0 %v225
        %v555 = vpop.f32.mrf.mxu0
        %v556 = vadd.f32 %v221, %v555
        %v557 = vpop.f32.mrf.mxu0
        %v558 = vadd.f32 %v221, %v557
        %559 = vdwg.mxu0
        %560 = vmatprep.subr.mxu0 0.0
        %561 = vmatpush1.msra.mxu0 0.0
        %562 = vmatprep.subr.mxu0 0.0
        %563 = vmatpush1.msra.mxu0 0.0
        %564 = vmatprep.subr.mxu0 0.0
        %565 = vmatpush1.msra.mxu0 0.0
        %566 = vmatprep.subr.mxu0 0.0
        %567 = vmatpush1.msra.mxu0 0.0
        %568 = vmatprep.subr.mxu0 0.0
        %569 = vmatpush1.msra.mxu0 0.0
        %570 = vmatprep.subr.mxu0 0.0
        %571 = vmatpush1.msra.mxu0 0.0
        %572 = vmatprep.subr.mxu0 0.0
        %573 = vmatpush1.msra.mxu0 0.0
        %574 = vmatprep.subr.mxu0 0.0
        %575 = vmatpush1.msra.mxu0 0.0
        %576 = vmatprep.subr.mxu0 0.0
        %577 = vmatpush1.msra.mxu0 0.0
        %578 = vmatprep.subr.mxu0 0.0
        %579 = vmatpush1.msra.mxu0 0.0
        %580 = vmatprep.subr.mxu0 0.0
        %581 = vmatpush1.msra.mxu0 0.0
        %582 = vmatprep.subr.mxu0 0.0
        %583 = vmatpush1.msra.mxu0 0.0
        %584 = vmatprep.subr.mxu0 0.0
        %585 = vmatpush1.msra.mxu0 0.0
        %586 = vmatprep.subr.mxu0 0.0
        %587 = vmatpush1.msra.mxu0 0.0
        %588 = vmatprep.subr.mxu0 0.0
        %589 = vmatpush1.msra.mxu0 0.0
        %590 = vmatprep.subr.mxu0 %v256
        %591 = vmatpush1.msra.mxu0 %v253
        %592 = vmatprep.subr.mxu0 0.0
        %593 = vmatpush2.msra.mxu0 0.0
        %594 = vmatprep.subr.mxu0 0.0
        %595 = vmatpush2.msra.mxu0 0.0
        %596 = vmatprep.subr.mxu0 0.0
        %597 = vmatpush2.msra.mxu0 0.0
        %598 = vmatprep.subr.mxu0 0.0
        %599 = vmatpush2.msra.mxu0 0.0
        %600 = vmatprep.subr.mxu0 0.0
        %601 = vmatpush2.msra.mxu0 0.0
        %602 = vmatprep.subr.mxu0 0.0
        %603 = vmatpush2.msra.mxu0 0.0
        %604 = vmatprep.subr.mxu0 0.0
        %605 = vmatpush2.msra.mxu0 0.0
        %606 = vmatprep.subr.mxu0 0.0
        %607 = vmatpush2.msra.mxu0 0.0
        %608 = vmatprep.subr.mxu0 0.0
        %609 = vmatpush2.msra.mxu0 0.0
        %610 = vmatprep.subr.mxu0 0.0
        %611 = vmatpush2.msra.mxu0 0.0
        %612 = vmatprep.subr.mxu0 0.0
        %613 = vmatpush2.msra.mxu0 0.0
        %614 = vmatprep.subr.mxu0 0.0
        %615 = vmatpush2.msra.mxu0 0.0
        %616 = vmatprep.subr.mxu0 0.0
        %617 = vmatpush2.msra.mxu0 0.0
        %618 = vmatprep.subr.mxu0 0.0
        %619 = vmatpush2.msra.mxu0 0.0
        %620 = vmatprep.subr.mxu0 0.0
        %621 = vmatpush2.msra.mxu0 0.0
        %622 = vmatprep.subr.mxu0 0.0
        %623 = vmatpush2.msra.mxu0 0.0
        %624 = vmatprep.mubr.f32.mxu0 0.0
        %625 = vmatmul.mubr.f32.gmra.mxu0 %v225
        %v626 = vpop.f32.mrf.mxu0
        %v627 = vadd.f32 %v221, %v626
        %v628 = vpop.f32.mrf.mxu0
        %v629 = vadd.f32 %v221, %v628
        %630 = vdwg.mxu0
        %631 = vmatprep.subr.mxu0 0.0
        %632 = vmatpush1.msra.mxu0 0.0
        %633 = vmatprep.subr.mxu0 0.0
        %634 = vmatpush1.msra.mxu0 0.0
        %635 = vmatprep.subr.mxu0 0.0
        %636 = vmatpush1.msra.mxu0 0.0
        %637 = vmatprep.subr.mxu0 0.0
        %638 = vmatpush1.msra.mxu0 0.0
        %639 = vmatprep.subr.mxu0 0.0
        %640 = vmatpush1.msra.mxu0 0.0
        %641 = vmatprep.subr.mxu0 0.0
        %642 = vmatpush1.msra.mxu0 0.0
        %643 = vmatprep.subr.mxu0 0.0
        %644 = vmatpush1.msra.mxu0 0.0
        %645 = vmatprep.subr.mxu0 0.0
        %646 = vmatpush1.msra.mxu0 0.0
        %647 = vmatprep.subr.mxu0 0.0
        %648 = vmatpush1.msra.mxu0 0.0
        %649 = vmatprep.subr.mxu0 0.0
        %650 = vmatpush1.msra.mxu0 0.0
        %651 = vmatprep.subr.mxu0 0.0
        %652 = vmatpush1.msra.mxu0 0.0
        %653 = vmatprep.subr.mxu0 0.0
        %654 = vmatpush1.msra.mxu0 0.0
        %655 = vmatprep.subr.mxu0 0.0
        %656 = vmatpush1.msra.mxu0 0.0
        %657 = vmatprep.subr.mxu0 0.0
        %658 = vmatpush1.msra.mxu0 0.0
        %659 = vmatprep.subr.mxu0 0.0
        %660 = vmatpush1.msra.mxu0 0.0
        %661 = vmatprep.subr.mxu0 %v262
        %662 = vmatpush1.msra.mxu0 %v259
        %663 = vmatprep.subr.mxu0 0.0
        %664 = vmatpush2.msra.mxu0 0.0
        %665 = vmatprep.subr.mxu0 0.0
        %666 = vmatpush2.msra.mxu0 0.0
        %667 = vmatprep.subr.mxu0 0.0
        %668 = vmatpush2.msra.mxu0 0.0
        %669 = vmatprep.subr.mxu0 0.0
        %670 = vmatpush2.msra.mxu0 0.0
        %671 = vmatprep.subr.mxu0 0.0
        %672 = vmatpush2.msra.mxu0 0.0
        %673 = vmatprep.subr.mxu0 0.0
        %674 = vmatpush2.msra.mxu0 0.0
        %675 = vmatprep.subr.mxu0 0.0
        %676 = vmatpush2.msra.mxu0 0.0
        %677 = vmatprep.subr.mxu0 0.0
        %678 = vmatpush2.msra.mxu0 0.0
        %679 = vmatprep.subr.mxu0 0.0
        %680 = vmatpush2.msra.mxu0 0.0
        %681 = vmatprep.subr.mxu0 0.0
        %682 = vmatpush2.msra.mxu0 0.0
        %683 = vmatprep.subr.mxu0 0.0
        %684 = vmatpush2.msra.mxu0 0.0
        %685 = vmatprep.subr.mxu0 0.0
        %686 = vmatpush2.msra.mxu0 0.0
        %687 = vmatprep.subr.mxu0 0.0
        %688 = vmatpush2.msra.mxu0 0.0
        %689 = vmatprep.subr.mxu0 0.0
        %690 = vmatpush2.msra.mxu0 0.0
        %691 = vmatprep.subr.mxu0 0.0
        %692 = vmatpush2.msra.mxu0 0.0
        %693 = vmatprep.subr.mxu0 0.0
        %694 = vmatpush2.msra.mxu0 0.0
        %695 = vmatprep.mubr.f32.mxu0 0.0
        %696 = vmatmul.mubr.f32.gmra.mxu0 %v225
        %v697 = vpop.f32.mrf.mxu0
        %v698 = vadd.f32 %v221, %v697
        %v699 = vpop.f32.mrf.mxu0
        %v700 = vadd.f32 %v221, %v699
        %701 = vdwg.mxu0
        %702 = vmatprep.subr.mxu0 0.0
        %703 = vmatpush1.msra.mxu0 0.0
        %704 = vmatprep.subr.mxu0 0.0
        %705 = vmatpush1.msra.mxu0 0.0
        %706 = vmatprep.subr.mxu0 0.0
        %707 = vmatpush1.msra.mxu0 0.0
        %708 = vmatprep.subr.mxu0 0.0
        %709 = vmatpush1.msra.mxu0 0.0
        %710 = vmatprep.subr.mxu0 0.0
        %711 = vmatpush1.msra.mxu0 0.0
        %712 = vmatprep.subr.mxu0 0.0
        %713 = vmatpush1.msra.mxu0 0.0
        %714 = vmatprep.subr.mxu0 0.0
        %715 = vmatpush1.msra.mxu0 0.0
        %716 = vmatprep.subr.mxu0 0.0
        %717 = vmatpush1.msra.mxu0 0.0
        %718 = vmatprep.subr.mxu0 0.0
        %719 = vmatpush1.msra.mxu0 0.0
        %720 = vmatprep.subr.mxu0 0.0
        %721 = vmatpush1.msra.mxu0 0.0
        %722 = vmatprep.subr.mxu0 0.0
        %723 = vmatpush1.msra.mxu0 0.0
        %724 = vmatprep.subr.mxu0 0.0
        %725 = vmatpush1.msra.mxu0 0.0
        %726 = vmatprep.subr.mxu0 0.0
        %727 = vmatpush1.msra.mxu0 0.0
        %728 = vmatprep.subr.mxu0 0.0
        %729 = vmatpush1.msra.mxu0 0.0
        %730 = vmatprep.subr.mxu0 0.0
        %731 = vmatpush1.msra.mxu0 0.0
        %732 = vmatprep.subr.mxu0 %v268
        %733 = vmatpush1.msra.mxu0 %v265
        %734 = vmatprep.subr.mxu0 0.0
        %735 = vmatpush2.msra.mxu0 0.0
        %736 = vmatprep.subr.mxu0 0.0
        %737 = vmatpush2.msra.mxu0 0.0
        %738 = vmatprep.subr.mxu0 0.0
        %739 = vmatpush2.msra.mxu0 0.0
        %740 = vmatprep.subr.mxu0 0.0
        %741 = vmatpush2.msra.mxu0 0.0
        %742 = vmatprep.subr.mxu0 0.0
        %743 = vmatpush2.msra.mxu0 0.0
        %744 = vmatprep.subr.mxu0 0.0
        %745 = vmatpush2.msra.mxu0 0.0
        %746 = vmatprep.subr.mxu0 0.0
        %747 = vmatpush2.msra.mxu0 0.0
        %748 = vmatprep.subr.mxu0 0.0
        %749 = vmatpush2.msra.mxu0 0.0
        %750 = vmatprep.subr.mxu0 0.0
        %751 = vmatpush2.msra.mxu0 0.0
        %752 = vmatprep.subr.mxu0 0.0
        %753 = vmatpush2.msra.mxu0 0.0
        %754 = vmatprep.subr.mxu0 0.0
        %755 = vmatpush2.msra.mxu0 0.0
        %756 = vmatprep.subr.mxu0 0.0
        %757 = vmatpush2.msra.mxu0 0.0
        %758 = vmatprep.subr.mxu0 0.0
        %759 = vmatpush2.msra.mxu0 0.0
        %760 = vmatprep.subr.mxu0 0.0
        %761 = vmatpush2.msra.mxu0 0.0
        %762 = vmatprep.subr.mxu0 0.0
        %763 = vmatpush2.msra.mxu0 0.0
        %764 = vmatprep.subr.mxu0 0.0
        %765 = vmatpush2.msra.mxu0 0.0
        %766 = vmatprep.mubr.f32.mxu0 0.0
        %767 = vmatmul.mubr.f32.gmra.mxu0 %v225
        %v768 = vpop.f32.mrf.mxu0
        %v769 = vadd.f32 %v221, %v768
        %v770 = vpop.f32.mrf.mxu0
        %v771 = vadd.f32 %v221, %v770
        %772 = vdwg.mxu0
        %773 = vmatprep.subr.mxu0 0.0
        %774 = vmatpush1.msra.mxu0 0.0
        %775 = vmatprep.subr.mxu0 0.0
        %776 = vmatpush1.msra.mxu0 0.0
        %777 = vmatprep.subr.mxu0 0.0
        %778 = vmatpush1.msra.mxu0 0.0
        %779 = vmatprep.subr.mxu0 0.0
        %780 = vmatpush1.msra.mxu0 0.0
        %781 = vmatprep.subr.mxu0 0.0
        %782 = vmatpush1.msra.mxu0 0.0
        %783 = vmatprep.subr.mxu0 0.0
        %784 = vmatpush1.msra.mxu0 0.0
        %785 = vmatprep.subr.mxu0 0.0
        %786 = vmatpush1.msra.mxu0 0.0
        %787 = vmatprep.subr.mxu0 0.0
        %788 = vmatpush1.msra.mxu0 0.0
        %789 = vmatprep.subr.mxu0 0.0
        %790 = vmatpush1.msra.mxu0 0.0
        %791 = vmatprep.subr.mxu0 0.0
        %792 = vmatpush1.msra.mxu0 0.0
        %793 = vmatprep.subr.mxu0 0.0
        %794 = vmatpush1.msra.mxu0 0.0
        %795 = vmatprep.subr.mxu0 0.0
        %796 = vmatpush1.msra.mxu0 0.0
        %797 = vmatprep.subr.mxu0 0.0
        %798 = vmatpush1.msra.mxu0 0.0
        %799 = vmatprep.subr.mxu0 0.0
        %800 = vmatpush1.msra.mxu0 0.0
        %801 = vmatprep.subr.mxu0 0.0
        %802 = vmatpush1.msra.mxu0 0.0
        %803 = vmatprep.subr.mxu0 %v274
        %804 = vmatpush1.msra.mxu0 %v271
        %805 = vmatprep.subr.mxu0 0.0
        %806 = vmatpush2.msra.mxu0 0.0
        %807 = vmatprep.subr.mxu0 0.0
        %808 = vmatpush2.msra.mxu0 0.0
        %809 = vmatprep.subr.mxu0 0.0
        %810 = vmatpush2.msra.mxu0 0.0
        %811 = vmatprep.subr.mxu0 0.0
        %812 = vmatpush2.msra.mxu0 0.0
        %813 = vmatprep.subr.mxu0 0.0
        %814 = vmatpush2.msra.mxu0 0.0
        %815 = vmatprep.subr.mxu0 0.0
        %816 = vmatpush2.msra.mxu0 0.0
        %817 = vmatprep.subr.mxu0 0.0
        %818 = vmatpush2.msra.mxu0 0.0
        %819 = vmatprep.subr.mxu0 0.0
        %820 = vmatpush2.msra.mxu0 0.0
        %821 = vmatprep.subr.mxu0 0.0
        %822 = vmatpush2.msra.mxu0 0.0
        %823 = vmatprep.subr.mxu0 0.0
        %824 = vmatpush2.msra.mxu0 0.0
        %825 = vmatprep.subr.mxu0 0.0
        %826 = vmatpush2.msra.mxu0 0.0
        %827 = vmatprep.subr.mxu0 0.0
        %828 = vmatpush2.msra.mxu0 0.0
        %829 = vmatprep.subr.mxu0 0.0
        %830 = vmatpush2.msra.mxu0 0.0
        %831 = vmatprep.subr.mxu0 0.0
        %832 = vmatpush2.msra.mxu0 0.0
        %833 = vmatprep.subr.mxu0 0.0
        %834 = vmatpush2.msra.mxu0 0.0
        %835 = vmatprep.subr.mxu0 0.0
        %836 = vmatpush2.msra.mxu0 0.0
        %837 = vmatprep.mubr.f32.mxu0 0.0
        %838 = vmatmul.mubr.f32.gmra.mxu0 %v225
        %v839 = vpop.f32.mrf.mxu0
        %v840 = vadd.f32 %v221, %v839
        %v841 = vpop.f32.mrf.mxu0
        %v842 = vadd.f32 %v221, %v841
        %843 = vdwg.mxu0
        %844 = vst [vmem:[%s188] sm:$0xff] %v343
        %845 = vst [vmem:[%s188 + $0x8] sm:$0xff] %v345
        %846 = vst [vmem:[%s188 + $0x10] sm:$0xff] %v414
        %847 = vst [vmem:[%s188 + $0x18] sm:$0xff] %v416
        %848 = vst [vmem:[%s188 + $0x20] sm:$0xff] %v485
        %849 = vst [vmem:[%s188 + $0x28] sm:$0xff] %v487
        %850 = vst [vmem:[%s188 + $0x30] sm:$0xff] %v556
        %851 = vst [vmem:[%s188 + $0x38] sm:$0xff] %v558
        %852 = vst [vmem:[%s188 + $0x40] sm:$0xff] %v627
        %853 = vst [vmem:[%s188 + $0x48] sm:$0xff] %v629
        %854 = vst [vmem:[%s188 + $0x50] sm:$0xff] %v698
        %855 = vst [vmem:[%s188 + $0x58] sm:$0xff] %v700
        %856 = vst [vmem:[%s188 + $0x60] sm:$0xff] %v769
        %857 = vst [vmem:[%s188 + $0x68] sm:$0xff] %v771
        %858 = vst [vmem:[%s188 + $0x70] sm:$0xff] %v840
        %859 = vst [vmem:[%s188 + $0x78] sm:$0xff] %v842
        %s860 = sand.u32 %s109, 1
        %s861 = scalar_lea.sflag [#allocation3], %s860
        %s862 = sand.u32 %s109, 1
        %s863 = smul.addr %s862, 128
        %s864 = scalar_lea.vmem [#allocation2], %s863
        // Predicated region
        $region33: #{tpu_custom_call.1} parent=31 // pred_check
          %p865 = pneg %p119
        $region34: #{tpu_custom_call.1} parent=31 // pred_check_branch
          %867 = sbr.rel (%p865) target = $region36
        $region35: #{tpu_custom_call.1} parent=31 // pred_region
          %s868 = smul.u32 16, %s22
          %s870 = ssub.s32 2048, 2048
          %871 = vsyncadd %s861, %s870
          %s872 = smul.addr %s21, 32
          %s873 = sadd.s32 %s868, %s872
          %s874 = smul.addr %s873, 128
          %s875 = scalar_lea.hbm %s3, %s874
          %s877 = sshll.u32 %s864, 4
          %s878 = int_to_ptr.vmem [resolvable:$true] %s877
          %880 = dma.vmem_to_hbm [thread:$0]  %s878, 2048, %s875, %s861
        $region36: #{tpu_custom_call.1} parent=31 // pred_fallthru
          _
      $region32: #{tpu_custom_call.1} parent=5 // pred_fallthru
        _
      %p881 = scmp.le.s32.totalorder 2, %s12
      // Predicated region
      $region37: #{tpu_custom_call.1} parent=5 // pred_check
        %p882 = pneg %p881
      $region38: #{tpu_custom_call.1} parent=5 // pred_check_branch
        %884 = sbr.rel (%p882) target = $region40
      $region39: #{tpu_custom_call.1} parent=5 // pred_region
        %s885 = ssub.s32 %s12, 2
        // Predicated region
        $region41: #{tpu_custom_call.1} parent=39 // pred_check
          %p886 = pneg %p125
        $region42: #{tpu_custom_call.1} parent=39 // pred_check_branch
          %888 = sbr.rel (%p886) target = $region44
        $region43: #{tpu_custom_call.1} parent=39 // pred_region
          %s889 = sand.u32 %s110, 1
          %s890 = scalar_lea.sflag [#allocation3], %s889
          %s891 = sand.u32 %s110, 1
          %s892 = smul.addr %s891, 128
          %s893 = scalar_lea.vmem [#allocation2], %s892
          %894 = dma.done %s890, 2048
        $region44: #{tpu_custom_call.1} parent=39 // pred_fallthru
          _
      $region40: #{tpu_custom_call.1} parent=5 // pred_fallthru
        _
    $region6: #{tpu_custom_call.1} parent=1 // loop_footer
      %s16 = sadd.s32 1, %s12
    $region7: #{tpu_custom_call.1} parent=1 // loop_footer_branch
      %11 = sbr.rel target = $region3
    $region8: #{tpu_custom_call.1} parent=1 // loop_exit
      _
    %895 = vsyncpa [#allocation3], 1
    %s896 = scalar_lea.sflag [#allocation3], 1
    %897 = vsyncpa %s896, 1

</llo_original>
